<compile_context>
chip_gen: v6e
topology: v6e:2x2x1
jax: 0.10.0
libtpu: 0.0.40
codegen_flags: <defaults>
</compile_context>

<pallas_src>
import jax
import jax.numpy as jnp
from jax.experimental import pallas as pl
from jax.experimental.pallas import tpu as pltpu


def _lr_kernel(ids_ref, c_ref, out_ref):
    # ids_ref: (F+1, TB)            int32  row 0: user id, rows 1..F: item ids + n_users
    # c_ref:   (n_chunks, 1, CHUNK) f32    precomputed per-row renorm-sum contributions
    # out_ref: (1, TB)              f32    logits for this batch tile
    n_slots, tb = ids_ref.shape
    n_chunks, _, chunk = c_ref.shape

    ids = ids_ref[...]                                          # (F+1, TB) int32

    def chunk_body(ck, acc):
        c_chunk = c_ref[ck]                                     # (1, chunk) f32
        row = jax.lax.broadcasted_iota(jnp.int32, (chunk, tb), 0) + ck * chunk
        counts = jnp.zeros((chunk, tb), jnp.float32)
        for f in range(n_slots):                                # small static slot count
            counts = counts + (row == ids[f:f + 1, :]).astype(jnp.float32)
        return acc + jnp.dot(c_chunk, counts,
                             preferred_element_type=jnp.float32,
                             precision=jax.lax.Precision.HIGHEST)

    total = jax.lax.fori_loop(0, n_chunks, chunk_body,
                              jnp.zeros((1, tb), jnp.float32), unroll=True)

    # sigmoid: exp + reciprocal both land on the EUP slot (approx recip is free).
    e = jnp.exp(-total)
    out_ref[...] = pl.reciprocal(1.0 + e, approx=True)


def _row_contrib(table):
    """Access-time renorm (max_norm=1) + per-row sum, computed on (V, dim)."""
    t = table.astype(jnp.float32)
    norm = jnp.sqrt(jnp.sum(t * t, axis=-1))
    scale = jnp.where(norm > 1.0, 1.0 / (norm + 1e-7), 1.0)
    return jnp.sum(t, axis=-1) * scale                          # (V,)


def lr_forward(u_idx, feat_idx, users, item_features, *, tb=512):
    """u_idx: (B,) int user ids; feat_idx: (B, F) int item-feature ids;
    users: (n_users, dim) f32; item_features: (vocab, dim) f32 -> (B,) f32 logits."""
    (B,) = u_idx.shape
    _, F = feat_idx.shape
    n_users = users.shape[0]
    vocab = item_features.shape[0]

    # Batch-independent contributions, hoisted out of the kernel and fused into
    # one lane-dense vector (user range [0, U), item range [U, U+V)).
    c = jnp.concatenate([_row_contrib(users), _row_contrib(item_features)])  # (U+V,)
    C = n_users + vocab
    c_pad = pl.cdiv(C, 128) * 128
    chunk = 256 if c_pad % 256 == 0 else 128
    n_chunks = c_pad // chunk
    c = (jnp.zeros((c_pad,), jnp.float32).at[:C].set(c)
         .reshape(n_chunks, 1, chunk))

    # Lane-dense batch tiles; clamp for tiny batches so tb divides b_pad.
    tb = max(128, min(tb, pl.cdiv(B, 128) * 128))
    b_pad = pl.cdiv(B, tb) * tb

    # Fused id block: user ids in row 0, offset item-feature ids in rows 1..F.
    ids = jnp.concatenate(
        [u_idx.astype(jnp.int32)[None, :],
         feat_idx.astype(jnp.int32).T + n_users], axis=0)       # (F+1, B)
    ids_p = jnp.zeros((F + 1, b_pad), jnp.int32).at[:, :B].set(ids)

    grid_spec = pltpu.PrefetchScalarGridSpec(
        num_scalar_prefetch=0,
        grid=(b_pad // tb,),
        in_specs=[
            pl.BlockSpec((F + 1, tb), lambda t: (0, t)),              # id tile
            pl.BlockSpec((n_chunks, 1, chunk), lambda t: (0, 0, 0)),  # contributions (small)
        ],
        out_specs=pl.BlockSpec((1, tb), lambda t: (0, t)),            # lane-dense logits
    )

    out = pl.pallas_call(
        _lr_kernel,
        out_shape=jax.ShapeDtypeStruct((1, b_pad), jnp.float32),
        grid_spec=grid_spec,
        compiler_params=pltpu.CompilerParams(
            dimension_semantics=("parallel",)),
    )(ids_p, c)

    return out[0, :B]


def lr_reference(u_idx, feat_idx, users, item_features):
    def renorm(t):
        n = jnp.linalg.norm(t, axis=-1, keepdims=True)
        return jnp.where(n > 1.0, t / (n + 1e-7), t)

    user_rows = renorm(users[u_idx])                 # (B, dim)
    item_rows = renorm(item_features[feat_idx])      # (B, F, dim)
    total = user_rows.sum(-1) + item_rows.sum((-1, -2))
    return jax.nn.sigmoid(total)


if __name__ == "__main__":
    # Small deterministic setup consistent with the module's __init__.
    n_users, n_items, n_feats, feat_vocab, dim, B = 16, 12, 5, 20, 32, 8
    key = jax.random.PRNGKey(0)
    k_tbl, k_u, k_i, k_ue, k_ie = jax.random.split(key, 5)

    # item_df equivalent: per-item feature-index table (n_items, n_feats)
    item_table = jax.random.randint(k_tbl, (n_items, n_feats), 0, feat_vocab,
                                    dtype=jnp.int32)

    # nn.Embedding default init ~ N(0, 1)
    users_w = jax.random.normal(k_ue, (n_users, dim), dtype=jnp.float32)
    item_feat_w = jax.random.normal(k_ie, (feat_vocab, dim), dtype=jnp.float32)

    u = jax.random.randint(k_u, (B,), 0, n_users, dtype=jnp.int32)
    i = jax.random.randint(k_i, (B,), 0, n_items, dtype=jnp.int32)

    # glue: item_df.loc[i].values -> per-batch item feature indices
    feat_idx = item_table[i]  # (B, n_feats) int32

    run = jax.jit(lr_forward)
    logits = jax.block_until_ready(run(u, feat_idx, users_w, item_feat_w))

    ref = lr_reference(u, feat_idx, users_w, item_feat_w)
    assert logits.shape == (B,) and logits.dtype == jnp.float32
    # approx reciprocal (EUP) contributes ~1e-4 absolute error on [0,1] outputs
    assert jnp.allclose(logits, ref, atol=2e-3), (logits, ref)
    print("KERNEL_OK")
</pallas_src>

<mosaic_0001>
module attributes {stable_mosaic.version = 11 : i64} {
  func.func @_lr_kernel(%arg0: i32, %arg1: memref<6x128xi32, #tpu.memory_space<vmem>>, %arg2: memref<1x1x128xf32, #tpu.memory_space<vmem>>, %arg3: memref<1x128xf32, #tpu.memory_space<vmem>>) attributes {dimension_semantics = [#tpu.dimension_semantics<parallel>], iteration_bounds = array<i64: 1>, scalar_prefetch = 0 : i64, scratch_operands = 0 : i64, tpu.core_type = #tpu.core_type<tc>, window_params = [{transform_indices = @transform_0, window_bounds = array<i64: 6, 128>}, {pipeline_mode = #tpu.pipeline_mode<synchronous>, transform_indices = @transform_1, window_bounds = array<i64: 1, 1, 128>}, {transform_indices = @transform_2, window_bounds = array<i64: 1, 128>}]} {
    %c0 = arith.constant 0 : index
    %c0_0 = arith.constant 0 : index
    %0 = vector.load %arg1[%c0, %c0_0] : memref<6x128xi32, #tpu.memory_space<vmem>>, vector<6x128xi32>
    %cst = arith.constant 0.000000e+00 : f32
    %1 = vector.broadcast %cst : f32 to vector<1x128xf32>
    %c0_i32 = arith.constant 0 : i32
    %2 = arith.index_cast %c0_i32 : i32 to index
    %c0_1 = arith.constant 0 : index
    %c0_2 = arith.constant 0 : index
    %3 = vector.load %arg2[%2, %c0_1, %c0_2] : memref<1x1x128xf32, #tpu.memory_space<vmem>>, vector<1x1x128xf32>
    %4 = vector.shape_cast %3 : vector<1x1x128xf32> to vector<1x128xf32>
    %5 = tpu.iota {dimensions = array<i32: 0>} : vector<128x128xi32>
    %c128_i32 = arith.constant 128 : i32
    %6 = arith.muli %c0_i32, %c128_i32 : i32
    %7 = vector.broadcast %6 : i32 to vector<128x128xi32>
    %8 = arith.addi %5, %7 : vector<128x128xi32>
    %cst_3 = arith.constant 0.000000e+00 : f32
    %9 = vector.broadcast %cst_3 : f32 to vector<128x128xf32>
    %10 = vector.extract_strided_slice %0 {offsets = [0, 0], sizes = [1, 128], strides = [1, 1]} : vector<6x128xi32> to vector<1x128xi32>
    %11 = vector.broadcast %10 : vector<1x128xi32> to vector<128x128xi32>
    %12 = arith.cmpi eq, %8, %11 : vector<128x128xi32>
    %13 = arith.extui %12 : vector<128x128xi1> to vector<128x128xi32>
    %14 = arith.sitofp %13 : vector<128x128xi32> to vector<128x128xf32>
    %15 = arith.addf %9, %14 : vector<128x128xf32>
    %16 = vector.extract_strided_slice %0 {offsets = [1, 0], sizes = [1, 128], strides = [1, 1]} : vector<6x128xi32> to vector<1x128xi32>
    %17 = vector.broadcast %16 : vector<1x128xi32> to vector<128x128xi32>
    %18 = arith.cmpi eq, %8, %17 : vector<128x128xi32>
    %19 = arith.extui %18 : vector<128x128xi1> to vector<128x128xi32>
    %20 = arith.sitofp %19 : vector<128x128xi32> to vector<128x128xf32>
    %21 = arith.addf %15, %20 : vector<128x128xf32>
    %22 = vector.extract_strided_slice %0 {offsets = [2, 0], sizes = [1, 128], strides = [1, 1]} : vector<6x128xi32> to vector<1x128xi32>
    %23 = vector.broadcast %22 : vector<1x128xi32> to vector<128x128xi32>
    %24 = arith.cmpi eq, %8, %23 : vector<128x128xi32>
    %25 = arith.extui %24 : vector<128x128xi1> to vector<128x128xi32>
    %26 = arith.sitofp %25 : vector<128x128xi32> to vector<128x128xf32>
    %27 = arith.addf %21, %26 : vector<128x128xf32>
    %28 = vector.extract_strided_slice %0 {offsets = [3, 0], sizes = [1, 128], strides = [1, 1]} : vector<6x128xi32> to vector<1x128xi32>
    %29 = vector.broadcast %28 : vector<1x128xi32> to vector<128x128xi32>
    %30 = arith.cmpi eq, %8, %29 : vector<128x128xi32>
    %31 = arith.extui %30 : vector<128x128xi1> to vector<128x128xi32>
    %32 = arith.sitofp %31 : vector<128x128xi32> to vector<128x128xf32>
    %33 = arith.addf %27, %32 : vector<128x128xf32>
    %34 = vector.extract_strided_slice %0 {offsets = [4, 0], sizes = [1, 128], strides = [1, 1]} : vector<6x128xi32> to vector<1x128xi32>
    %35 = vector.broadcast %34 : vector<1x128xi32> to vector<128x128xi32>
    %36 = arith.cmpi eq, %8, %35 : vector<128x128xi32>
    %37 = arith.extui %36 : vector<128x128xi1> to vector<128x128xi32>
    %38 = arith.sitofp %37 : vector<128x128xi32> to vector<128x128xf32>
    %39 = arith.addf %33, %38 : vector<128x128xf32>
    %40 = vector.extract_strided_slice %0 {offsets = [5, 0], sizes = [1, 128], strides = [1, 1]} : vector<6x128xi32> to vector<1x128xi32>
    %41 = vector.broadcast %40 : vector<1x128xi32> to vector<128x128xi32>
    %42 = arith.cmpi eq, %8, %41 : vector<128x128xi32>
    %43 = arith.extui %42 : vector<128x128xi1> to vector<128x128xi32>
    %44 = arith.sitofp %43 : vector<128x128xi32> to vector<128x128xf32>
    %45 = arith.addf %39, %44 : vector<128x128xf32>
    %cst_4 = arith.constant dense<0.000000e+00> : vector<1x128xf32>
    %46 = tpu.matmul %4, %45, %cst_4 {dimension_numbers = #tpu.dot_dimension_numbers<[1], [0], [0], [1], [0, 0, 1, 1], [], []>, precision = #tpu.contract_precision<fp32>} : vector<1x128xf32>, vector<128x128xf32>, vector<1x128xf32> -> vector<1x128xf32>
    %47 = arith.addf %1, %46 : vector<1x128xf32>
    %c1_i32 = arith.constant 1 : i32
    %cst_5 = arith.constant 0.000000e+00 : f32
    %48 = vector.broadcast %cst_5 : f32 to vector<1x128xf32>
    %49 = arith.subf %48, %47 : vector<1x128xf32>
    %50 = math.exp %49 : vector<1x128xf32>
    %cst_6 = arith.constant 1.000000e+00 : f32
    %51 = vector.broadcast %cst_6 : f32 to vector<1x128xf32>
    %52 = arith.addf %51, %50 : vector<1x128xf32>
    %53 = tpu.reciprocal %52 {approx = true} : vector<1x128xf32> -> vector<1x128xf32>
    %c0_7 = arith.constant 0 : index
    %c0_8 = arith.constant 0 : index
    %54 = vector.load %arg3[%c0_7, %c0_8] : memref<1x128xf32, #tpu.memory_space<vmem>>, vector<1x128xf32>
    tpu.vector_store %arg3[%c0_7, %c0_8], %53 {strides = array<i32>} : memref<1x128xf32, #tpu.memory_space<vmem>>, vector<1x128xf32>,
    return
  }
  func.func @transform_0(%arg0: i32) -> (i32, i32) {
    %c0_i32 = arith.constant 0 : i32
    %c0_i32_0 = arith.constant 0 : i32
    return %c0_i32, %arg0 : i32, i32
  }
  func.func @transform_1(%arg0: i32) -> (i32, i32, i32) {
    %c0_i32 = arith.constant 0 : i32
    %c0_i32_0 = arith.constant 0 : i32
    %c0_i32_1 = arith.constant 0 : i32
    %c0_i32_2 = arith.constant 0 : i32
    return %c0_i32, %c0_i32_0, %c0_i32_1 : i32, i32, i32
  }
  func.func @transform_2(%arg0: i32) -> (i32, i32) {
    %c0_i32 = arith.constant 0 : i32
    %c0_i32_0 = arith.constant 0 : i32
    return %c0_i32, %arg0 : i32, i32
  }
}

</mosaic_0001>

<llo_original>
// kernel: lr_forward.1
$region0: #{lr_forward.1}
  #allocation0 [shape = 'u32[]', space=smem, size = 0x4, offset = 0x4, fixed_abs, tag = 'smem constant byte address 0x4 - core index']
  #allocation1 [shape = 'u32[144,128]{1,0:T(1,128)}', space=vmem, size = 0x12000, scoped, tag = 'internal scratch']
  %s0 = inlined_call_operand.vmem [shape: s32[6,128], index: 0, kind: input, shape index: {}]
  %s1 = inlined_call_operand.vmem [shape: f32[1,1,128], index: 1, kind: input, shape index: {}]
  %s2 = inlined_call_operand.vmem [shape: f32[1,128], index: 2, kind: output, shape index: {}]
  %s3 = sld [smem:[#allocation0]]
  $region18: #{lr_forward.1} parent=0
    _
  %s5 = ssub.s32 1, %s3
  %s6 = scalar_select 0, %s5, %s3
  // Predicated region
  $region2: #{lr_forward.1} parent=0 // pred_check
    _
  $region3: #{lr_forward.1} parent=0 // pred_check_branch
    %8 = sbr.rel (0) target = $region5
  $region4: #{lr_forward.1} parent=0 // pred_region
    _
  $region5: #{lr_forward.1} parent=0 // pred_fallthru
    _
  // Predicated region
  $region6: #{lr_forward.1} parent=0 // pred_check
    _
  $region7: #{lr_forward.1} parent=0 // pred_check_branch
    %10 = sbr.rel (0) target = $region9
  $region8: #{lr_forward.1} parent=0 // pred_region
    _
  $region9: #{lr_forward.1} parent=0 // pred_fallthru
    _
  %v11 = vld [vmem:[%s0] sm:$0x3f]
  %v12 = vld [vmem:[%s1] sm:$0x1]
  %v13 = vlaneseq
  %v14 = vshrl.u32 %v13, 7
  %v15 = vadd.s32 %v14, 8
  %v16 = vadd.s32 %v14, 16
  %v17 = vadd.s32 %v14, 24
  %v18 = vadd.s32 %v14, 32
  %v19 = vadd.s32 %v14, 40
  %v20 = vadd.s32 %v14, 48
  %v21 = vadd.s32 %v14, 56
  %v22 = vadd.s32 %v14, 64
  %v23 = vadd.s32 %v14, 72
  %v24 = vadd.s32 %v14, 80
  %v25 = vadd.s32 %v14, 88
  %v26 = vadd.s32 %v14, 96
  %v27 = vadd.s32 %v14, 104
  %v28 = vadd.s32 %v14, 112
  %v29 = vadd.s32 %v14, 120
  %v30 = vlaneseq
  %v31 = vshrl.u32 %v30, 7
  %v32 = vsub.s32 0, %v31
  %v33 = vrot.slane %v11, %v32
  %vm34 = vcmp.eq.s32.totalorder %v14, %v33
  %vm35 = vcmp.eq.s32.totalorder %v15, %v33
  %vm36 = vcmp.eq.s32.totalorder %v16, %v33
  %vm37 = vcmp.eq.s32.totalorder %v17, %v33
  %vm38 = vcmp.eq.s32.totalorder %v18, %v33
  %vm39 = vcmp.eq.s32.totalorder %v19, %v33
  %vm40 = vcmp.eq.s32.totalorder %v20, %v33
  %vm41 = vcmp.eq.s32.totalorder %v21, %v33
  %vm42 = vcmp.eq.s32.totalorder %v22, %v33
  %vm43 = vcmp.eq.s32.totalorder %v23, %v33
  %vm44 = vcmp.eq.s32.totalorder %v24, %v33
  %vm45 = vcmp.eq.s32.totalorder %v25, %v33
  %vm46 = vcmp.eq.s32.totalorder %v26, %v33
  %vm47 = vcmp.eq.s32.totalorder %v27, %v33
  %vm48 = vcmp.eq.s32.totalorder %v28, %v33
  %vm49 = vcmp.eq.s32.totalorder %v29, %v33
  %v50 = vsel %vm34, 1, 0
  %v51 = vsel %vm35, 1, 0
  %v52 = vsel %vm36, 1, 0
  %v53 = vsel %vm37, 1, 0
  %v54 = vsel %vm38, 1, 0
  %v55 = vsel %vm39, 1, 0
  %v56 = vsel %vm40, 1, 0
  %v57 = vsel %vm41, 1, 0
  %v58 = vsel %vm42, 1, 0
  %v59 = vsel %vm43, 1, 0
  %v60 = vsel %vm44, 1, 0
  %v61 = vsel %vm45, 1, 0
  %v62 = vsel %vm46, 1, 0
  %v63 = vsel %vm47, 1, 0
  %v64 = vsel %vm48, 1, 0
  %v65 = vsel %vm49, 1, 0
  %v66 = vcvt.s32.f32 %v50
  %v67 = vcvt.s32.f32 %v51
  %v68 = vcvt.s32.f32 %v52
  %v69 = vcvt.s32.f32 %v53
  %v70 = vcvt.s32.f32 %v54
  %v71 = vcvt.s32.f32 %v55
  %v72 = vcvt.s32.f32 %v56
  %v73 = vcvt.s32.f32 %v57
  %v74 = vcvt.s32.f32 %v58
  %v75 = vcvt.s32.f32 %v59
  %v76 = vcvt.s32.f32 %v60
  %v77 = vcvt.s32.f32 %v61
  %v78 = vcvt.s32.f32 %v62
  %v79 = vcvt.s32.f32 %v63
  %v80 = vcvt.s32.f32 %v64
  %v81 = vcvt.s32.f32 %v65
  %v82 = vadd.f32 %v66, 0.0
  %v83 = vadd.f32 %v67, 0.0
  %v84 = vadd.f32 %v68, 0.0
  %v85 = vadd.f32 %v69, 0.0
  %v86 = vadd.f32 %v70, 0.0
  %v87 = vadd.f32 %v71, 0.0
  %v88 = vadd.f32 %v72, 0.0
  %v89 = vadd.f32 %v73, 0.0
  %v90 = vadd.f32 %v74, 0.0
  %v91 = vadd.f32 %v75, 0.0
  %v92 = vadd.f32 %v76, 0.0
  %v93 = vadd.f32 %v77, 0.0
  %v94 = vadd.f32 %v78, 0.0
  %v95 = vadd.f32 %v79, 0.0
  %v96 = vadd.f32 %v80, 0.0
  %v97 = vadd.f32 %v81, 0.0
  %v98 = vlaneseq
  %v99 = vshrl.u32 %v98, 7
  %v100 = vsub.s32 1, %v99
  %v101 = vrot.slane %v11, %v100
  %vm102 = vcmp.eq.s32.totalorder %v14, %v101
  %vm103 = vcmp.eq.s32.totalorder %v15, %v101
  %vm104 = vcmp.eq.s32.totalorder %v16, %v101
  %vm105 = vcmp.eq.s32.totalorder %v17, %v101
  %vm106 = vcmp.eq.s32.totalorder %v18, %v101
  %vm107 = vcmp.eq.s32.totalorder %v19, %v101
  %vm108 = vcmp.eq.s32.totalorder %v20, %v101
  %vm109 = vcmp.eq.s32.totalorder %v21, %v101
  %vm110 = vcmp.eq.s32.totalorder %v22, %v101
  %vm111 = vcmp.eq.s32.totalorder %v23, %v101
  %vm112 = vcmp.eq.s32.totalorder %v24, %v101
  %vm113 = vcmp.eq.s32.totalorder %v25, %v101
  %vm114 = vcmp.eq.s32.totalorder %v26, %v101
  %vm115 = vcmp.eq.s32.totalorder %v27, %v101
  %vm116 = vcmp.eq.s32.totalorder %v28, %v101
  %vm117 = vcmp.eq.s32.totalorder %v29, %v101
  %v118 = vsel %vm102, 1, 0
  %v119 = vsel %vm103, 1, 0
  %v120 = vsel %vm104, 1, 0
  %v121 = vsel %vm105, 1, 0
  %v122 = vsel %vm106, 1, 0
  %v123 = vsel %vm107, 1, 0
  %v124 = vsel %vm108, 1, 0
  %v125 = vsel %vm109, 1, 0
  %v126 = vsel %vm110, 1, 0
  %v127 = vsel %vm111, 1, 0
  %v128 = vsel %vm112, 1, 0
  %v129 = vsel %vm113, 1, 0
  %v130 = vsel %vm114, 1, 0
  %v131 = vsel %vm115, 1, 0
  %v132 = vsel %vm116, 1, 0
  %v133 = vsel %vm117, 1, 0
  %v134 = vcvt.s32.f32 %v118
  %v135 = vcvt.s32.f32 %v119
  %v136 = vcvt.s32.f32 %v120
  %v137 = vcvt.s32.f32 %v121
  %v138 = vcvt.s32.f32 %v122
  %v139 = vcvt.s32.f32 %v123
  %v140 = vcvt.s32.f32 %v124
  %v141 = vcvt.s32.f32 %v125
  %v142 = vcvt.s32.f32 %v126
  %v143 = vcvt.s32.f32 %v127
  %v144 = vcvt.s32.f32 %v128
  %v145 = vcvt.s32.f32 %v129
  %v146 = vcvt.s32.f32 %v130
  %v147 = vcvt.s32.f32 %v131
  %v148 = vcvt.s32.f32 %v132
  %v149 = vcvt.s32.f32 %v133
  %v150 = vadd.f32 %v82, %v134
  %v151 = vadd.f32 %v83, %v135
  %v152 = vadd.f32 %v84, %v136
  %v153 = vadd.f32 %v85, %v137
  %v154 = vadd.f32 %v86, %v138
  %v155 = vadd.f32 %v87, %v139
  %v156 = vadd.f32 %v88, %v140
  %v157 = vadd.f32 %v89, %v141
  %v158 = vadd.f32 %v90, %v142
  %v159 = vadd.f32 %v91, %v143
  %v160 = vadd.f32 %v92, %v144
  %v161 = vadd.f32 %v93, %v145
  %v162 = vadd.f32 %v94, %v146
  %v163 = vadd.f32 %v95, %v147
  %v164 = vadd.f32 %v96, %v148
  %v165 = vadd.f32 %v97, %v149
  %v166 = vlaneseq
  %v167 = vshrl.u32 %v166, 7
  %v168 = vsub.s32 2, %v167
  %v169 = vrot.slane %v11, %v168
  %vm170 = vcmp.eq.s32.totalorder %v14, %v169
  %vm171 = vcmp.eq.s32.totalorder %v15, %v169
  %vm172 = vcmp.eq.s32.totalorder %v16, %v169
  %vm173 = vcmp.eq.s32.totalorder %v17, %v169
  %vm174 = vcmp.eq.s32.totalorder %v18, %v169
  %vm175 = vcmp.eq.s32.totalorder %v19, %v169
  %vm176 = vcmp.eq.s32.totalorder %v20, %v169
  %vm177 = vcmp.eq.s32.totalorder %v21, %v169
  %vm178 = vcmp.eq.s32.totalorder %v22, %v169
  %vm179 = vcmp.eq.s32.totalorder %v23, %v169
  %vm180 = vcmp.eq.s32.totalorder %v24, %v169
  %vm181 = vcmp.eq.s32.totalorder %v25, %v169
  %vm182 = vcmp.eq.s32.totalorder %v26, %v169
  %vm183 = vcmp.eq.s32.totalorder %v27, %v169
  %vm184 = vcmp.eq.s32.totalorder %v28, %v169
  %vm185 = vcmp.eq.s32.totalorder %v29, %v169
  %v186 = vsel %vm170, 1, 0
  %v187 = vsel %vm171, 1, 0
  %v188 = vsel %vm172, 1, 0
  %v189 = vsel %vm173, 1, 0
  %v190 = vsel %vm174, 1, 0
  %v191 = vsel %vm175, 1, 0
  %v192 = vsel %vm176, 1, 0
  %v193 = vsel %vm177, 1, 0
  %v194 = vsel %vm178, 1, 0
  %v195 = vsel %vm179, 1, 0
  %v196 = vsel %vm180, 1, 0
  %v197 = vsel %vm181, 1, 0
  %v198 = vsel %vm182, 1, 0
  %v199 = vsel %vm183, 1, 0
  %v200 = vsel %vm184, 1, 0
  %v201 = vsel %vm185, 1, 0
  %v202 = vcvt.s32.f32 %v186
  %v203 = vcvt.s32.f32 %v187
  %v204 = vcvt.s32.f32 %v188
  %v205 = vcvt.s32.f32 %v189
  %v206 = vcvt.s32.f32 %v190
  %v207 = vcvt.s32.f32 %v191
  %v208 = vcvt.s32.f32 %v192
  %v209 = vcvt.s32.f32 %v193
  %v210 = vcvt.s32.f32 %v194
  %v211 = vcvt.s32.f32 %v195
  %v212 = vcvt.s32.f32 %v196
  %v213 = vcvt.s32.f32 %v197
  %v214 = vcvt.s32.f32 %v198
  %v215 = vcvt.s32.f32 %v199
  %v216 = vcvt.s32.f32 %v200
  %v217 = vcvt.s32.f32 %v201
  %v218 = vadd.f32 %v150, %v202
  %v219 = vadd.f32 %v151, %v203
  %v220 = vadd.f32 %v152, %v204
  %v221 = vadd.f32 %v153, %v205
  %v222 = vadd.f32 %v154, %v206
  %v223 = vadd.f32 %v155, %v207
  %v224 = vadd.f32 %v156, %v208
  %v225 = vadd.f32 %v157, %v209
  %v226 = vadd.f32 %v158, %v210
  %v227 = vadd.f32 %v159, %v211
  %v228 = vadd.f32 %v160, %v212
  %v229 = vadd.f32 %v161, %v213
  %v230 = vadd.f32 %v162, %v214
  %v231 = vadd.f32 %v163, %v215
  %v232 = vadd.f32 %v164, %v216
  %v233 = vadd.f32 %v165, %v217
  %v234 = vlaneseq
  %v235 = vshrl.u32 %v234, 7
  %v236 = vsub.s32 3, %v235
  %v237 = vrot.slane %v11, %v236
  %vm238 = vcmp.eq.s32.totalorder %v14, %v237
  %vm239 = vcmp.eq.s32.totalorder %v15, %v237
  %vm240 = vcmp.eq.s32.totalorder %v16, %v237
  %vm241 = vcmp.eq.s32.totalorder %v17, %v237
  %vm242 = vcmp.eq.s32.totalorder %v18, %v237
  %vm243 = vcmp.eq.s32.totalorder %v19, %v237
  %vm244 = vcmp.eq.s32.totalorder %v20, %v237
  %vm245 = vcmp.eq.s32.totalorder %v21, %v237
  %vm246 = vcmp.eq.s32.totalorder %v22, %v237
  %vm247 = vcmp.eq.s32.totalorder %v23, %v237
  %vm248 = vcmp.eq.s32.totalorder %v24, %v237
  %vm249 = vcmp.eq.s32.totalorder %v25, %v237
  %vm250 = vcmp.eq.s32.totalorder %v26, %v237
  %vm251 = vcmp.eq.s32.totalorder %v27, %v237
  %vm252 = vcmp.eq.s32.totalorder %v28, %v237
  %vm253 = vcmp.eq.s32.totalorder %v29, %v237
  %v254 = vsel %vm238, 1, 0
  %v255 = vsel %vm239, 1, 0
  %v256 = vsel %vm240, 1, 0
  %v257 = vsel %vm241, 1, 0
  %v258 = vsel %vm242, 1, 0
  %v259 = vsel %vm243, 1, 0
  %v260 = vsel %vm244, 1, 0
  %v261 = vsel %vm245, 1, 0
  %v262 = vsel %vm246, 1, 0
  %v263 = vsel %vm247, 1, 0
  %v264 = vsel %vm248, 1, 0
  %v265 = vsel %vm249, 1, 0
  %v266 = vsel %vm250, 1, 0
  %v267 = vsel %vm251, 1, 0
  %v268 = vsel %vm252, 1, 0
  %v269 = vsel %vm253, 1, 0
  %v270 = vcvt.s32.f32 %v254
  %v271 = vcvt.s32.f32 %v255
  %v272 = vcvt.s32.f32 %v256
  %v273 = vcvt.s32.f32 %v257
  %v274 = vcvt.s32.f32 %v258
  %v275 = vcvt.s32.f32 %v259
  %v276 = vcvt.s32.f32 %v260
  %v277 = vcvt.s32.f32 %v261
  %v278 = vcvt.s32.f32 %v262
  %v279 = vcvt.s32.f32 %v263
  %v280 = vcvt.s32.f32 %v264
  %v281 = vcvt.s32.f32 %v265
  %v282 = vcvt.s32.f32 %v266
  %v283 = vcvt.s32.f32 %v267
  %v284 = vcvt.s32.f32 %v268
  %v285 = vcvt.s32.f32 %v269
  %v286 = vadd.f32 %v218, %v270
  %v287 = vadd.f32 %v219, %v271
  %v288 = vadd.f32 %v220, %v272
  %v289 = vadd.f32 %v221, %v273
  %v290 = vadd.f32 %v222, %v274
  %v291 = vadd.f32 %v223, %v275
  %v292 = vadd.f32 %v224, %v276
  %v293 = vadd.f32 %v225, %v277
  %v294 = vadd.f32 %v226, %v278
  %v295 = vadd.f32 %v227, %v279
  %v296 = vadd.f32 %v228, %v280
  %v297 = vadd.f32 %v229, %v281
  %v298 = vadd.f32 %v230, %v282
  %v299 = vadd.f32 %v231, %v283
  %v300 = vadd.f32 %v232, %v284
  %v301 = vadd.f32 %v233, %v285
  %v302 = vlaneseq
  %v303 = vshrl.u32 %v302, 7
  %v304 = vsub.s32 4, %v303
  %v305 = vrot.slane %v11, %v304
  %vm306 = vcmp.eq.s32.totalorder %v14, %v305
  %vm307 = vcmp.eq.s32.totalorder %v15, %v305
  %vm308 = vcmp.eq.s32.totalorder %v16, %v305
  %vm309 = vcmp.eq.s32.totalorder %v17, %v305
  %vm310 = vcmp.eq.s32.totalorder %v18, %v305
  %vm311 = vcmp.eq.s32.totalorder %v19, %v305
  %vm312 = vcmp.eq.s32.totalorder %v20, %v305
  %vm313 = vcmp.eq.s32.totalorder %v21, %v305
  %vm314 = vcmp.eq.s32.totalorder %v22, %v305
  %vm315 = vcmp.eq.s32.totalorder %v23, %v305
  %vm316 = vcmp.eq.s32.totalorder %v24, %v305
  %vm317 = vcmp.eq.s32.totalorder %v25, %v305
  %vm318 = vcmp.eq.s32.totalorder %v26, %v305
  %vm319 = vcmp.eq.s32.totalorder %v27, %v305
  %vm320 = vcmp.eq.s32.totalorder %v28, %v305
  %vm321 = vcmp.eq.s32.totalorder %v29, %v305
  %v322 = vsel %vm306, 1, 0
  %v323 = vsel %vm307, 1, 0
  %v324 = vsel %vm308, 1, 0
  %v325 = vsel %vm309, 1, 0
  %v326 = vsel %vm310, 1, 0
  %v327 = vsel %vm311, 1, 0
  %v328 = vsel %vm312, 1, 0
  %v329 = vsel %vm313, 1, 0
  %v330 = vsel %vm314, 1, 0
  %v331 = vsel %vm315, 1, 0
  %v332 = vsel %vm316, 1, 0
  %v333 = vsel %vm317, 1, 0
  %v334 = vsel %vm318, 1, 0
  %v335 = vsel %vm319, 1, 0
  %v336 = vsel %vm320, 1, 0
  %v337 = vsel %vm321, 1, 0
  %v338 = vcvt.s32.f32 %v322
  %v339 = vcvt.s32.f32 %v323
  %v340 = vcvt.s32.f32 %v324
  %v341 = vcvt.s32.f32 %v325
  %v342 = vcvt.s32.f32 %v326
  %v343 = vcvt.s32.f32 %v327
  %v344 = vcvt.s32.f32 %v328
  %v345 = vcvt.s32.f32 %v329
  %v346 = vcvt.s32.f32 %v330
  %v347 = vcvt.s32.f32 %v331
  %v348 = vcvt.s32.f32 %v332
  %v349 = vcvt.s32.f32 %v333
  %v350 = vcvt.s32.f32 %v334
  %v351 = vcvt.s32.f32 %v335
  %v352 = vcvt.s32.f32 %v336
  %v353 = vcvt.s32.f32 %v337
  %v354 = vadd.f32 %v286, %v338
  %v355 = vadd.f32 %v287, %v339
  %v356 = vadd.f32 %v288, %v340
  %v357 = vadd.f32 %v289, %v341
  %v358 = vadd.f32 %v290, %v342
  %v359 = vadd.f32 %v291, %v343
  %v360 = vadd.f32 %v292, %v344
  %v361 = vadd.f32 %v293, %v345
  %v362 = vadd.f32 %v294, %v346
  %v363 = vadd.f32 %v295, %v347
  %v364 = vadd.f32 %v296, %v348
  %v365 = vadd.f32 %v297, %v349
  %v366 = vadd.f32 %v298, %v350
  %v367 = vadd.f32 %v299, %v351
  %v368 = vadd.f32 %v300, %v352
  %v369 = vadd.f32 %v301, %v353
  %v370 = vlaneseq
  %v371 = vshrl.u32 %v370, 7
  %v372 = vsub.s32 5, %v371
  %v373 = vrot.slane %v11, %v372
  %vm374 = vcmp.eq.s32.totalorder %v14, %v373
  %vm375 = vcmp.eq.s32.totalorder %v15, %v373
  %vm376 = vcmp.eq.s32.totalorder %v16, %v373
  %vm377 = vcmp.eq.s32.totalorder %v17, %v373
  %vm378 = vcmp.eq.s32.totalorder %v18, %v373
  %vm379 = vcmp.eq.s32.totalorder %v19, %v373
  %vm380 = vcmp.eq.s32.totalorder %v20, %v373
  %vm381 = vcmp.eq.s32.totalorder %v21, %v373
  %vm382 = vcmp.eq.s32.totalorder %v22, %v373
  %vm383 = vcmp.eq.s32.totalorder %v23, %v373
  %vm384 = vcmp.eq.s32.totalorder %v24, %v373
  %vm385 = vcmp.eq.s32.totalorder %v25, %v373
  %vm386 = vcmp.eq.s32.totalorder %v26, %v373
  %vm387 = vcmp.eq.s32.totalorder %v27, %v373
  %vm388 = vcmp.eq.s32.totalorder %v28, %v373
  %vm389 = vcmp.eq.s32.totalorder %v29, %v373
  %v390 = vsel %vm374, 1, 0
  %v391 = vsel %vm375, 1, 0
  %v392 = vsel %vm376, 1, 0
  %v393 = vsel %vm377, 1, 0
  %v394 = vsel %vm378, 1, 0
  %v395 = vsel %vm379, 1, 0
  %v396 = vsel %vm380, 1, 0
  %v397 = vsel %vm381, 1, 0
  %v398 = vsel %vm382, 1, 0
  %v399 = vsel %vm383, 1, 0
  %v400 = vsel %vm384, 1, 0
  %v401 = vsel %vm385, 1, 0
  %v402 = vsel %vm386, 1, 0
  %v403 = vsel %vm387, 1, 0
  %v404 = vsel %vm388, 1, 0
  %v405 = vsel %vm389, 1, 0
  %v406 = vcvt.s32.f32 %v390
  %v407 = vcvt.s32.f32 %v391
  %v408 = vcvt.s32.f32 %v392
  %v409 = vcvt.s32.f32 %v393
  %v410 = vcvt.s32.f32 %v394
  %v411 = vcvt.s32.f32 %v395
  %v412 = vcvt.s32.f32 %v396
  %v413 = vcvt.s32.f32 %v397
  %v414 = vcvt.s32.f32 %v398
  %v415 = vcvt.s32.f32 %v399
  %v416 = vcvt.s32.f32 %v400
  %v417 = vcvt.s32.f32 %v401
  %v418 = vcvt.s32.f32 %v402
  %v419 = vcvt.s32.f32 %v403
  %v420 = vcvt.s32.f32 %v404
  %v421 = vcvt.s32.f32 %v405
  %v422 = vadd.f32 %v354, %v406
  %v423 = vadd.f32 %v355, %v407
  %v424 = vadd.f32 %v356, %v408
  %v425 = vadd.f32 %v357, %v409
  %v426 = vadd.f32 %v358, %v410
  %v427 = vadd.f32 %v359, %v411
  %v428 = vadd.f32 %v360, %v412
  %v429 = vadd.f32 %v361, %v413
  %v430 = vadd.f32 %v362, %v414
  %v431 = vadd.f32 %v363, %v415
  %v432 = vadd.f32 %v364, %v416
  %v433 = vadd.f32 %v365, %v417
  %v434 = vadd.f32 %v366, %v418
  %v435 = vadd.f32 %v367, %v419
  %v436 = vadd.f32 %v368, %v420
  %v437 = vadd.f32 %v369, %v421
  %438 = vmatprep.subr.mxu0 0.0
  %v439 = vand.u32 %v437, 4294901760
  %440 = vmatpush1.msra.mxu0 %v439
  %441 = vmatprep.subr.mxu0 0.0
  %v442 = vand.u32 %v436, 4294901760
  %443 = vmatpush1.msra.mxu0 %v442
  %444 = vmatprep.subr.mxu0 0.0
  %v445 = vand.u32 %v435, 4294901760
  %446 = vmatpush1.msra.mxu0 %v445
  %447 = vmatprep.subr.mxu0 0.0
  %v448 = vand.u32 %v434, 4294901760
  %449 = vmatpush1.msra.mxu0 %v448
  %450 = vmatprep.subr.mxu0 0.0
  %v451 = vand.u32 %v433, 4294901760
  %452 = vmatpush1.msra.mxu0 %v451
  %453 = vmatprep.subr.mxu0 0.0
  %v454 = vand.u32 %v432, 4294901760
  %455 = vmatpush1.msra.mxu0 %v454
  %456 = vmatprep.subr.mxu0 0.0
  %v457 = vand.u32 %v431, 4294901760
  %458 = vmatpush1.msra.mxu0 %v457
  %459 = vmatprep.subr.mxu0 0.0
  %v460 = vand.u32 %v430, 4294901760
  %461 = vmatpush1.msra.mxu0 %v460
  %462 = vmatprep.subr.mxu0 0.0
  %v463 = vand.u32 %v429, 4294901760
  %464 = vmatpush1.msra.mxu0 %v463
  %465 = vmatprep.subr.mxu0 0.0
  %v466 = vand.u32 %v428, 4294901760
  %467 = vmatpush1.msra.mxu0 %v466
  %468 = vmatprep.subr.mxu0 0.0
  %v469 = vand.u32 %v427, 4294901760
  %470 = vmatpush1.msra.mxu0 %v469
  %471 = vmatprep.subr.mxu0 0.0
  %v472 = vand.u32 %v426, 4294901760
  %473 = vmatpush1.msra.mxu0 %v472
  %474 = vmatprep.subr.mxu0 0.0
  %v475 = vand.u32 %v425, 4294901760
  %476 = vmatpush1.msra.mxu0 %v475
  %477 = vmatprep.subr.mxu0 0.0
  %v478 = vand.u32 %v424, 4294901760
  %479 = vmatpush1.msra.mxu0 %v478
  %480 = vmatprep.subr.mxu0 0.0
  %v481 = vand.u32 %v423, 4294901760
  %482 = vmatpush1.msra.mxu0 %v481
  %483 = vmatprep.subr.mxu0 0.0
  %v484 = vand.u32 %v422, 4294901760
  %485 = vmatpush1.msra.mxu0 %v484
  %486 = vmatprep.subr.mxu0 0.0
  %487 = vmatpush2.msra.mxu0 0.0
  %488 = vmatprep.subr.mxu0 0.0
  %489 = vmatpush2.msra.mxu0 0.0
  %490 = vmatprep.subr.mxu0 0.0
  %491 = vmatpush2.msra.mxu0 0.0
  %492 = vmatprep.subr.mxu0 0.0
  %493 = vmatpush2.msra.mxu0 0.0
  %494 = vmatprep.subr.mxu0 0.0
  %495 = vmatpush2.msra.mxu0 0.0
  %496 = vmatprep.subr.mxu0 0.0
  %497 = vmatpush2.msra.mxu0 0.0
  %498 = vmatprep.subr.mxu0 0.0
  %499 = vmatpush2.msra.mxu0 0.0
  %500 = vmatprep.subr.mxu0 0.0
  %501 = vmatpush2.msra.mxu0 0.0
  %502 = vmatprep.subr.mxu0 0.0
  %503 = vmatpush2.msra.mxu0 0.0
  %504 = vmatprep.subr.mxu0 0.0
  %505 = vmatpush2.msra.mxu0 0.0
  %506 = vmatprep.subr.mxu0 0.0
  %507 = vmatpush2.msra.mxu0 0.0
  %508 = vmatprep.subr.mxu0 0.0
  %509 = vmatpush2.msra.mxu0 0.0
  %510 = vmatprep.subr.mxu0 0.0
  %511 = vmatpush2.msra.mxu0 0.0
  %512 = vmatprep.subr.mxu0 0.0
  %513 = vmatpush2.msra.mxu0 0.0
  %514 = vmatprep.subr.mxu0 0.0
  %515 = vmatpush2.msra.mxu0 0.0
  %516 = vmatprep.subr.mxu0 0.0
  %517 = vmatpush2.msra.mxu0 0.0
  %518 = vmatprep.mubr.f32.mxu0 0.0
  %v519 = vand.u32 %v12, 4294901760
  %v520 = vsub.f32 %v12, %v519
  %v521 = vand.u32 %v520, 4294901760
  %v522 = vsub.f32 %v520, %v521
  %v523 = vand.u32 %v522, 4294901760
  %524 = vmatmul.mubr.f32.gmra.mxu0 %v523
  %v525 = vpop.f32.mrf.mxu0
  %v526 = vadd.f32 0.0, %v525
  %v527 = vpop.f32.mrf.mxu0
  %528 = vdwg.mxu0
  %529 = vmatprep.subr.mxu0 0.0
  %v530 = vand.u32 %v437, 4294901760
  %v531 = vsub.f32 %v437, %v530
  %v532 = vand.u32 %v531, 4294901760
  %v533 = vsub.f32 %v531, %v532
  %v534 = vand.u32 %v533, 4294901760
  %535 = vmatpush1.msra.mxu0 %v534
  %536 = vmatprep.subr.mxu0 0.0
  %v537 = vand.u32 %v436, 4294901760
  %v538 = vsub.f32 %v436, %v537
  %v539 = vand.u32 %v538, 4294901760
  %v540 = vsub.f32 %v538, %v539
  %v541 = vand.u32 %v540, 4294901760
  %542 = vmatpush1.msra.mxu0 %v541
  %543 = vmatprep.subr.mxu0 0.0
  %v544 = vand.u32 %v435, 4294901760
  %v545 = vsub.f32 %v435, %v544
  %v546 = vand.u32 %v545, 4294901760
  %v547 = vsub.f32 %v545, %v546
  %v548 = vand.u32 %v547, 4294901760
  %549 = vmatpush1.msra.mxu0 %v548
  %550 = vmatprep.subr.mxu0 0.0
  %v551 = vand.u32 %v434, 4294901760
  %v552 = vsub.f32 %v434, %v551
  %v553 = vand.u32 %v552, 4294901760
  %v554 = vsub.f32 %v552, %v553
  %v555 = vand.u32 %v554, 4294901760
  %556 = vmatpush1.msra.mxu0 %v555
  %557 = vmatprep.subr.mxu0 0.0
  %v558 = vand.u32 %v433, 4294901760
  %v559 = vsub.f32 %v433, %v558
  %v560 = vand.u32 %v559, 4294901760
  %v561 = vsub.f32 %v559, %v560
  %v562 = vand.u32 %v561, 4294901760
  %563 = vmatpush1.msra.mxu0 %v562
  %564 = vmatprep.subr.mxu0 0.0
  %v565 = vand.u32 %v432, 4294901760
  %v566 = vsub.f32 %v432, %v565
  %v567 = vand.u32 %v566, 4294901760
  %v568 = vsub.f32 %v566, %v567
  %v569 = vand.u32 %v568, 4294901760
  %570 = vmatpush1.msra.mxu0 %v569
  %571 = vmatprep.subr.mxu0 0.0
  %v572 = vand.u32 %v431, 4294901760
  %v573 = vsub.f32 %v431, %v572
  %v574 = vand.u32 %v573, 4294901760
  %v575 = vsub.f32 %v573, %v574
  %v576 = vand.u32 %v575, 4294901760
  %577 = vmatpush1.msra.mxu0 %v576
  %578 = vmatprep.subr.mxu0 0.0
  %v579 = vand.u32 %v430, 4294901760
  %v580 = vsub.f32 %v430, %v579
  %v581 = vand.u32 %v580, 4294901760
  %v582 = vsub.f32 %v580, %v581
  %v583 = vand.u32 %v582, 4294901760
  %584 = vmatpush1.msra.mxu0 %v583
  %585 = vmatprep.subr.mxu0 0.0
  %v586 = vand.u32 %v429, 4294901760
  %v587 = vsub.f32 %v429, %v586
  %v588 = vand.u32 %v587, 4294901760
  %v589 = vsub.f32 %v587, %v588
  %v590 = vand.u32 %v589, 4294901760
  %591 = vmatpush1.msra.mxu0 %v590
  %592 = vmatprep.subr.mxu0 0.0
  %v593 = vand.u32 %v428, 4294901760
  %v594 = vsub.f32 %v428, %v593
  %v595 = vand.u32 %v594, 4294901760
  %v596 = vsub.f32 %v594, %v595
  %v597 = vand.u32 %v596, 4294901760
  %598 = vmatpush1.msra.mxu0 %v597
  %599 = vmatprep.subr.mxu0 0.0
  %v600 = vand.u32 %v427, 4294901760
  %v601 = vsub.f32 %v427, %v600
  %v602 = vand.u32 %v601, 4294901760
  %v603 = vsub.f32 %v601, %v602
  %v604 = vand.u32 %v603, 4294901760
  %605 = vmatpush1.msra.mxu0 %v604
  %606 = vmatprep.subr.mxu0 0.0
  %v607 = vand.u32 %v426, 4294901760
  %v608 = vsub.f32 %v426, %v607
  %v609 = vand.u32 %v608, 4294901760
  %v610 = vsub.f32 %v608, %v609
  %v611 = vand.u32 %v610, 4294901760
  %612 = vmatpush1.msra.mxu0 %v611
  %613 = vmatprep.subr.mxu0 0.0
  %v614 = vand.u32 %v425, 4294901760
  %v615 = vsub.f32 %v425, %v614
  %v616 = vand.u32 %v615, 4294901760
  %v617 = vsub.f32 %v615, %v616
  %v618 = vand.u32 %v617, 4294901760
  %619 = vmatpush1.msra.mxu0 %v618
  %620 = vmatprep.subr.mxu0 0.0
  %v621 = vand.u32 %v424, 4294901760
  %v622 = vsub.f32 %v424, %v621
  %v623 = vand.u32 %v622, 4294901760
  %v624 = vsub.f32 %v622, %v623
  %v625 = vand.u32 %v624, 4294901760
  %626 = vmatpush1.msra.mxu0 %v625
  %627 = vmatprep.subr.mxu0 0.0
  %v628 = vand.u32 %v423, 4294901760
  %v629 = vsub.f32 %v423, %v628
  %v630 = vand.u32 %v629, 4294901760
  %v631 = vsub.f32 %v629, %v630
  %v632 = vand.u32 %v631, 4294901760
  %633 = vmatpush1.msra.mxu0 %v632
  %634 = vmatprep.subr.mxu0 0.0
  %v635 = vand.u32 %v422, 4294901760
  %v636 = vsub.f32 %v422, %v635
  %v637 = vand.u32 %v636, 4294901760
  %v638 = vsub.f32 %v636, %v637
  %v639 = vand.u32 %v638, 4294901760
  %640 = vmatpush1.msra.mxu0 %v639
  %641 = vmatprep.subr.mxu0 0.0
  %642 = vmatpush2.msra.mxu0 0.0
  %643 = vmatprep.subr.mxu0 0.0
  %644 = vmatpush2.msra.mxu0 0.0
  %645 = vmatprep.subr.mxu0 0.0
  %646 = vmatpush2.msra.mxu0 0.0
  %647 = vmatprep.subr.mxu0 0.0
  %648 = vmatpush2.msra.mxu0 0.0
  %649 = vmatprep.subr.mxu0 0.0
  %650 = vmatpush2.msra.mxu0 0.0
  %651 = vmatprep.subr.mxu0 0.0
  %652 = vmatpush2.msra.mxu0 0.0
  %653 = vmatprep.subr.mxu0 0.0
  %654 = vmatpush2.msra.mxu0 0.0
  %655 = vmatprep.subr.mxu0 0.0
  %656 = vmatpush2.msra.mxu0 0.0
  %657 = vmatprep.subr.mxu0 0.0
  %658 = vmatpush2.msra.mxu0 0.0
  %659 = vmatprep.subr.mxu0 0.0
  %660 = vmatpush2.msra.mxu0 0.0
  %661 = vmatprep.subr.mxu0 0.0
  %662 = vmatpush2.msra.mxu0 0.0
  %663 = vmatprep.subr.mxu0 0.0
  %664 = vmatpush2.msra.mxu0 0.0
  %665 = vmatprep.subr.mxu0 0.0
  %666 = vmatpush2.msra.mxu0 0.0
  %667 = vmatprep.subr.mxu0 0.0
  %668 = vmatpush2.msra.mxu0 0.0
  %669 = vmatprep.subr.mxu0 0.0
  %670 = vmatpush2.msra.mxu0 0.0
  %671 = vmatprep.subr.mxu0 0.0
  %672 = vmatpush2.msra.mxu0 0.0
  %673 = vmatprep.mubr.f32.mxu0 0.0
  %v674 = vand.u32 %v12, 4294901760
  %675 = vmatmul.mubr.f32.gmra.mxu0 %v674
  %v676 = vpop.f32.mrf.mxu0
  %v677 = vadd.f32 %v526, %v676
  %v678 = vpop.f32.mrf.mxu0
  %679 = vdwg.mxu0
  %680 = vmatprep.subr.mxu0 0.0
  %v681 = vand.u32 %v437, 4294901760
  %v682 = vsub.f32 %v437, %v681
  %683 = vmatpush1.msra.mxu0 %v682
  %684 = vmatprep.subr.mxu0 0.0
  %v685 = vand.u32 %v436, 4294901760
  %v686 = vsub.f32 %v436, %v685
  %687 = vmatpush1.msra.mxu0 %v686
  %688 = vmatprep.subr.mxu0 0.0
  %v689 = vand.u32 %v435, 4294901760
  %v690 = vsub.f32 %v435, %v689
  %691 = vmatpush1.msra.mxu0 %v690
  %692 = vmatprep.subr.mxu0 0.0
  %v693 = vand.u32 %v434, 4294901760
  %v694 = vsub.f32 %v434, %v693
  %695 = vmatpush1.msra.mxu0 %v694
  %696 = vmatprep.subr.mxu0 0.0
  %v697 = vand.u32 %v433, 4294901760
  %v698 = vsub.f32 %v433, %v697
  %699 = vmatpush1.msra.mxu0 %v698
  %700 = vmatprep.subr.mxu0 0.0
  %v701 = vand.u32 %v432, 4294901760
  %v702 = vsub.f32 %v432, %v701
  %703 = vmatpush1.msra.mxu0 %v702
  %704 = vmatprep.subr.mxu0 0.0
  %v705 = vand.u32 %v431, 4294901760
  %v706 = vsub.f32 %v431, %v705
  %707 = vmatpush1.msra.mxu0 %v706
  %708 = vmatprep.subr.mxu0 0.0
  %v709 = vand.u32 %v430, 4294901760
  %v710 = vsub.f32 %v430, %v709
  %711 = vmatpush1.msra.mxu0 %v710
  %712 = vmatprep.subr.mxu0 0.0
  %v713 = vand.u32 %v429, 4294901760
  %v714 = vsub.f32 %v429, %v713
  %715 = vmatpush1.msra.mxu0 %v714
  %716 = vmatprep.subr.mxu0 0.0
  %v717 = vand.u32 %v428, 4294901760
  %v718 = vsub.f32 %v428, %v717
  %719 = vmatpush1.msra.mxu0 %v718
  %720 = vmatprep.subr.mxu0 0.0
  %v721 = vand.u32 %v427, 4294901760
  %v722 = vsub.f32 %v427, %v721
  %723 = vmatpush1.msra.mxu0 %v722
  %724 = vmatprep.subr.mxu0 0.0
  %v725 = vand.u32 %v426, 4294901760
  %v726 = vsub.f32 %v426, %v725
  %727 = vmatpush1.msra.mxu0 %v726
  %728 = vmatprep.subr.mxu0 0.0
  %v729 = vand.u32 %v425, 4294901760
  %v730 = vsub.f32 %v425, %v729
  %731 = vmatpush1.msra.mxu0 %v730
  %732 = vmatprep.subr.mxu0 0.0
  %v733 = vand.u32 %v424, 4294901760
  %v734 = vsub.f32 %v424, %v733
  %735 = vmatpush1.msra.mxu0 %v734
  %736 = vmatprep.subr.mxu0 0.0
  %v737 = vand.u32 %v423, 4294901760
  %v738 = vsub.f32 %v423, %v737
  %739 = vmatpush1.msra.mxu0 %v738
  %740 = vmatprep.subr.mxu0 0.0
  %v741 = vand.u32 %v422, 4294901760
  %v742 = vsub.f32 %v422, %v741
  %743 = vmatpush1.msra.mxu0 %v742
  %744 = vmatprep.subr.mxu0 0.0
  %745 = vmatpush2.msra.mxu0 0.0
  %746 = vmatprep.subr.mxu0 0.0
  %747 = vmatpush2.msra.mxu0 0.0
  %748 = vmatprep.subr.mxu0 0.0
  %749 = vmatpush2.msra.mxu0 0.0
  %750 = vmatprep.subr.mxu0 0.0
  %751 = vmatpush2.msra.mxu0 0.0
  %752 = vmatprep.subr.mxu0 0.0
  %753 = vmatpush2.msra.mxu0 0.0
  %754 = vmatprep.subr.mxu0 0.0
  %755 = vmatpush2.msra.mxu0 0.0
  %756 = vmatprep.subr.mxu0 0.0
  %757 = vmatpush2.msra.mxu0 0.0
  %758 = vmatprep.subr.mxu0 0.0
  %759 = vmatpush2.msra.mxu0 0.0
  %760 = vmatprep.subr.mxu0 0.0
  %761 = vmatpush2.msra.mxu0 0.0
  %762 = vmatprep.subr.mxu0 0.0
  %763 = vmatpush2.msra.mxu0 0.0
  %764 = vmatprep.subr.mxu0 0.0
  %765 = vmatpush2.msra.mxu0 0.0
  %766 = vmatprep.subr.mxu0 0.0
  %767 = vmatpush2.msra.mxu0 0.0
  %768 = vmatprep.subr.mxu0 0.0
  %769 = vmatpush2.msra.mxu0 0.0
  %770 = vmatprep.subr.mxu0 0.0
  %771 = vmatpush2.msra.mxu0 0.0
  %772 = vmatprep.subr.mxu0 0.0
  %773 = vmatpush2.msra.mxu0 0.0
  %774 = vmatprep.subr.mxu0 0.0
  %775 = vmatpush2.msra.mxu0 0.0
  %776 = vmatprep.mubr.f32.mxu0 0.0
  %v777 = vand.u32 %v12, 4294901760
  %v778 = vsub.f32 %v12, %v777
  %779 = vmatmul.mubr.f32.gmra.mxu0 %v778
  %v780 = vpop.f32.mrf.mxu0
  %v781 = vadd.f32 %v677, %v780
  %v782 = vpop.f32.mrf.mxu0
  %783 = vdwg.mxu0
  %784 = vmatprep.subr.mxu0 0.0
  %v785 = vand.u32 %v437, 4294901760
  %786 = vmatpush1.msra.mxu0 %v785
  %787 = vmatprep.subr.mxu0 0.0
  %v788 = vand.u32 %v436, 4294901760
  %789 = vmatpush1.msra.mxu0 %v788
  %790 = vmatprep.subr.mxu0 0.0
  %v791 = vand.u32 %v435, 4294901760
  %792 = vmatpush1.msra.mxu0 %v791
  %793 = vmatprep.subr.mxu0 0.0
  %v794 = vand.u32 %v434, 4294901760
  %795 = vmatpush1.msra.mxu0 %v794
  %796 = vmatprep.subr.mxu0 0.0
  %v797 = vand.u32 %v433, 4294901760
  %798 = vmatpush1.msra.mxu0 %v797
  %799 = vmatprep.subr.mxu0 0.0
  %v800 = vand.u32 %v432, 4294901760
  %801 = vmatpush1.msra.mxu0 %v800
  %802 = vmatprep.subr.mxu0 0.0
  %v803 = vand.u32 %v431, 4294901760
  %804 = vmatpush1.msra.mxu0 %v803
  %805 = vmatprep.subr.mxu0 0.0
  %v806 = vand.u32 %v430, 4294901760
  %807 = vmatpush1.msra.mxu0 %v806
  %808 = vmatprep.subr.mxu0 0.0
  %v809 = vand.u32 %v429, 4294901760
  %810 = vmatpush1.msra.mxu0 %v809
  %811 = vmatprep.subr.mxu0 0.0
  %v812 = vand.u32 %v428, 4294901760
  %813 = vmatpush1.msra.mxu0 %v812
  %814 = vmatprep.subr.mxu0 0.0
  %v815 = vand.u32 %v427, 4294901760
  %816 = vmatpush1.msra.mxu0 %v815
  %817 = vmatprep.subr.mxu0 0.0
  %v818 = vand.u32 %v426, 4294901760
  %819 = vmatpush1.msra.mxu0 %v818
  %820 = vmatprep.subr.mxu0 0.0
  %v821 = vand.u32 %v425, 4294901760
  %822 = vmatpush1.msra.mxu0 %v821
  %823 = vmatprep.subr.mxu0 0.0
  %v824 = vand.u32 %v424, 4294901760
  %825 = vmatpush1.msra.mxu0 %v824
  %826 = vmatprep.subr.mxu0 0.0
  %v827 = vand.u32 %v423, 4294901760
  %828 = vmatpush1.msra.mxu0 %v827
  %829 = vmatprep.subr.mxu0 0.0
  %v830 = vand.u32 %v422, 4294901760
  %831 = vmatpush1.msra.mxu0 %v830
  %832 = vmatprep.subr.mxu0 0.0
  %833 = vmatpush2.msra.mxu0 0.0
  %834 = vmatprep.subr.mxu0 0.0
  %835 = vmatpush2.msra.mxu0 0.0
  %836 = vmatprep.subr.mxu0 0.0
  %837 = vmatpush2.msra.mxu0 0.0
  %838 = vmatprep.subr.mxu0 0.0
  %839 = vmatpush2.msra.mxu0 0.0
  %840 = vmatprep.subr.mxu0 0.0
  %841 = vmatpush2.msra.mxu0 0.0
  %842 = vmatprep.subr.mxu0 0.0
  %843 = vmatpush2.msra.mxu0 0.0
  %844 = vmatprep.subr.mxu0 0.0
  %845 = vmatpush2.msra.mxu0 0.0
  %846 = vmatprep.subr.mxu0 0.0
  %847 = vmatpush2.msra.mxu0 0.0
  %848 = vmatprep.subr.mxu0 0.0
  %849 = vmatpush2.msra.mxu0 0.0
  %850 = vmatprep.subr.mxu0 0.0
  %851 = vmatpush2.msra.mxu0 0.0
  %852 = vmatprep.subr.mxu0 0.0
  %853 = vmatpush2.msra.mxu0 0.0
  %854 = vmatprep.subr.mxu0 0.0
  %855 = vmatpush2.msra.mxu0 0.0
  %856 = vmatprep.subr.mxu0 0.0
  %857 = vmatpush2.msra.mxu0 0.0
  %858 = vmatprep.subr.mxu0 0.0
  %859 = vmatpush2.msra.mxu0 0.0
  %860 = vmatprep.subr.mxu0 0.0
  %861 = vmatpush2.msra.mxu0 0.0
  %862 = vmatprep.subr.mxu0 0.0
  %863 = vmatpush2.msra.mxu0 0.0
  %864 = vmatprep.mubr.f32.mxu0 0.0
  %v865 = vand.u32 %v12, 4294901760
  %v866 = vsub.f32 %v12, %v865
  %v867 = vand.u32 %v866, 4294901760
  %868 = vmatmul.mubr.f32.gmra.mxu0 %v867
  %v869 = vpop.f32.mrf.mxu0
  %v870 = vadd.f32 %v781, %v869
  %v871 = vpop.f32.mrf.mxu0
  %872 = vdwg.mxu0
  %873 = vmatprep.subr.mxu0 0.0
  %v874 = vand.u32 %v437, 4294901760
  %v875 = vsub.f32 %v437, %v874
  %v876 = vand.u32 %v875, 4294901760
  %877 = vmatpush1.msra.mxu0 %v876
  %878 = vmatprep.subr.mxu0 0.0
  %v879 = vand.u32 %v436, 4294901760
  %v880 = vsub.f32 %v436, %v879
  %v881 = vand.u32 %v880, 4294901760
  %882 = vmatpush1.msra.mxu0 %v881
  %883 = vmatprep.subr.mxu0 0.0
  %v884 = vand.u32 %v435, 4294901760
  %v885 = vsub.f32 %v435, %v884
  %v886 = vand.u32 %v885, 4294901760
  %887 = vmatpush1.msra.mxu0 %v886
  %888 = vmatprep.subr.mxu0 0.0
  %v889 = vand.u32 %v434, 4294901760
  %v890 = vsub.f32 %v434, %v889
  %v891 = vand.u32 %v890, 4294901760
  %892 = vmatpush1.msra.mxu0 %v891
  %893 = vmatprep.subr.mxu0 0.0
  %v894 = vand.u32 %v433, 4294901760
  %v895 = vsub.f32 %v433, %v894
  %v896 = vand.u32 %v895, 4294901760
  %897 = vmatpush1.msra.mxu0 %v896
  %898 = vmatprep.subr.mxu0 0.0
  %v899 = vand.u32 %v432, 4294901760
  %v900 = vsub.f32 %v432, %v899
  %v901 = vand.u32 %v900, 4294901760
  %902 = vmatpush1.msra.mxu0 %v901
  %903 = vmatprep.subr.mxu0 0.0
  %v904 = vand.u32 %v431, 4294901760
  %v905 = vsub.f32 %v431, %v904
  %v906 = vand.u32 %v905, 4294901760
  %907 = vmatpush1.msra.mxu0 %v906
  %908 = vmatprep.subr.mxu0 0.0
  %v909 = vand.u32 %v430, 4294901760
  %v910 = vsub.f32 %v430, %v909
  %v911 = vand.u32 %v910, 4294901760
  %912 = vmatpush1.msra.mxu0 %v911
  %913 = vmatprep.subr.mxu0 0.0
  %v914 = vand.u32 %v429, 4294901760
  %v915 = vsub.f32 %v429, %v914
  %v916 = vand.u32 %v915, 4294901760
  %917 = vmatpush1.msra.mxu0 %v916
  %918 = vmatprep.subr.mxu0 0.0
  %v919 = vand.u32 %v428, 4294901760
  %v920 = vsub.f32 %v428, %v919
  %v921 = vand.u32 %v920, 4294901760
  %922 = vmatpush1.msra.mxu0 %v921
  %923 = vmatprep.subr.mxu0 0.0
  %v924 = vand.u32 %v427, 4294901760
  %v925 = vsub.f32 %v427, %v924
  %v926 = vand.u32 %v925, 4294901760
  %927 = vmatpush1.msra.mxu0 %v926
  %928 = vmatprep.subr.mxu0 0.0
  %v929 = vand.u32 %v426, 4294901760
  %v930 = vsub.f32 %v426, %v929
  %v931 = vand.u32 %v930, 4294901760
  %932 = vmatpush1.msra.mxu0 %v931
  %933 = vmatprep.subr.mxu0 0.0
  %v934 = vand.u32 %v425, 4294901760
  %v935 = vsub.f32 %v425, %v934
  %v936 = vand.u32 %v935, 4294901760
  %937 = vmatpush1.msra.mxu0 %v936
  %938 = vmatprep.subr.mxu0 0.0
  %v939 = vand.u32 %v424, 4294901760
  %v940 = vsub.f32 %v424, %v939
  %v941 = vand.u32 %v940, 4294901760
  %942 = vmatpush1.msra.mxu0 %v941
  %943 = vmatprep.subr.mxu0 0.0
  %v944 = vand.u32 %v423, 4294901760
  %v945 = vsub.f32 %v423, %v944
  %v946 = vand.u32 %v945, 4294901760
  %947 = vmatpush1.msra.mxu0 %v946
  %948 = vmatprep.subr.mxu0 0.0
  %v949 = vand.u32 %v422, 4294901760
  %v950 = vsub.f32 %v422, %v949
  %v951 = vand.u32 %v950, 4294901760
  %952 = vmatpush1.msra.mxu0 %v951
  %953 = vmatprep.subr.mxu0 0.0
  %954 = vmatpush2.msra.mxu0 0.0
  %955 = vmatprep.subr.mxu0 0.0
  %956 = vmatpush2.msra.mxu0 0.0
  %957 = vmatprep.subr.mxu0 0.0
  %958 = vmatpush2.msra.mxu0 0.0
  %959 = vmatprep.subr.mxu0 0.0
  %960 = vmatpush2.msra.mxu0 0.0
  %961 = vmatprep.subr.mxu0 0.0
  %962 = vmatpush2.msra.mxu0 0.0
  %963 = vmatprep.subr.mxu0 0.0
  %964 = vmatpush2.msra.mxu0 0.0
  %965 = vmatprep.subr.mxu0 0.0
  %966 = vmatpush2.msra.mxu0 0.0
  %967 = vmatprep.subr.mxu0 0.0
  %968 = vmatpush2.msra.mxu0 0.0
  %969 = vmatprep.subr.mxu0 0.0
  %970 = vmatpush2.msra.mxu0 0.0
  %971 = vmatprep.subr.mxu0 0.0
  %972 = vmatpush2.msra.mxu0 0.0
  %973 = vmatprep.subr.mxu0 0.0
  %974 = vmatpush2.msra.mxu0 0.0
  %975 = vmatprep.subr.mxu0 0.0
  %976 = vmatpush2.msra.mxu0 0.0
  %977 = vmatprep.subr.mxu0 0.0
  %978 = vmatpush2.msra.mxu0 0.0
  %979 = vmatprep.subr.mxu0 0.0
  %980 = vmatpush2.msra.mxu0 0.0
  %981 = vmatprep.subr.mxu0 0.0
  %982 = vmatpush2.msra.mxu0 0.0
  %983 = vmatprep.subr.mxu0 0.0
  %984 = vmatpush2.msra.mxu0 0.0
  %985 = vmatprep.mubr.f32.mxu0 0.0
  %v986 = vand.u32 %v12, 4294901760
  %987 = vmatmul.mubr.f32.gmra.mxu0 %v986
  %v988 = vpop.f32.mrf.mxu0
  %v989 = vadd.f32 %v870, %v988
  %v990 = vpop.f32.mrf.mxu0
  %991 = vdwg.mxu0
  %992 = vmatprep.subr.mxu0 0.0
  %v993 = vand.u32 %v437, 4294901760
  %994 = vmatpush1.msra.mxu0 %v993
  %995 = vmatprep.subr.mxu0 0.0
  %v996 = vand.u32 %v436, 4294901760
  %997 = vmatpush1.msra.mxu0 %v996
  %998 = vmatprep.subr.mxu0 0.0
  %v999 = vand.u32 %v435, 4294901760
  %1000 = vmatpush1.msra.mxu0 %v999
  %1001 = vmatprep.subr.mxu0 0.0
  %v1002 = vand.u32 %v434, 4294901760
  %1003 = vmatpush1.msra.mxu0 %v1002
  %1004 = vmatprep.subr.mxu0 0.0
  %v1005 = vand.u32 %v433, 4294901760
  %1006 = vmatpush1.msra.mxu0 %v1005
  %1007 = vmatprep.subr.mxu0 0.0
  %v1008 = vand.u32 %v432, 4294901760
  %1009 = vmatpush1.msra.mxu0 %v1008
  %1010 = vmatprep.subr.mxu0 0.0
  %v1011 = vand.u32 %v431, 4294901760
  %1012 = vmatpush1.msra.mxu0 %v1011
  %1013 = vmatprep.subr.mxu0 0.0
  %v1014 = vand.u32 %v430, 4294901760
  %1015 = vmatpush1.msra.mxu0 %v1014
  %1016 = vmatprep.subr.mxu0 0.0
  %v1017 = vand.u32 %v429, 4294901760
  %1018 = vmatpush1.msra.mxu0 %v1017
  %1019 = vmatprep.subr.mxu0 0.0
  %v1020 = vand.u32 %v428, 4294901760
  %1021 = vmatpush1.msra.mxu0 %v1020
  %1022 = vmatprep.subr.mxu0 0.0
  %v1023 = vand.u32 %v427, 4294901760
  %1024 = vmatpush1.msra.mxu0 %v1023
  %1025 = vmatprep.subr.mxu0 0.0
  %v1026 = vand.u32 %v426, 4294901760
  %1027 = vmatpush1.msra.mxu0 %v1026
  %1028 = vmatprep.subr.mxu0 0.0
  %v1029 = vand.u32 %v425, 4294901760
  %1030 = vmatpush1.msra.mxu0 %v1029
  %1031 = vmatprep.subr.mxu0 0.0
  %v1032 = vand.u32 %v424, 4294901760
  %1033 = vmatpush1.msra.mxu0 %v1032
  %1034 = vmatprep.subr.mxu0 0.0
  %v1035 = vand.u32 %v423, 4294901760
  %1036 = vmatpush1.msra.mxu0 %v1035
  %1037 = vmatprep.subr.mxu0 0.0
  %v1038 = vand.u32 %v422, 4294901760
  %1039 = vmatpush1.msra.mxu0 %v1038
  %1040 = vmatprep.subr.mxu0 0.0
  %1041 = vmatpush2.msra.mxu0 0.0
  %1042 = vmatprep.subr.mxu0 0.0
  %1043 = vmatpush2.msra.mxu0 0.0
  %1044 = vmatprep.subr.mxu0 0.0
  %1045 = vmatpush2.msra.mxu0 0.0
  %1046 = vmatprep.subr.mxu0 0.0
  %1047 = vmatpush2.msra.mxu0 0.0
  %1048 = vmatprep.subr.mxu0 0.0
  %1049 = vmatpush2.msra.mxu0 0.0
  %1050 = vmatprep.subr.mxu0 0.0
  %1051 = vmatpush2.msra.mxu0 0.0
  %1052 = vmatprep.subr.mxu0 0.0
  %1053 = vmatpush2.msra.mxu0 0.0
  %1054 = vmatprep.subr.mxu0 0.0
  %1055 = vmatpush2.msra.mxu0 0.0
  %1056 = vmatprep.subr.mxu0 0.0
  %1057 = vmatpush2.msra.mxu0 0.0
  %1058 = vmatprep.subr.mxu0 0.0
  %1059 = vmatpush2.msra.mxu0 0.0
  %1060 = vmatprep.subr.mxu0 0.0
  %1061 = vmatpush2.msra.mxu0 0.0
  %1062 = vmatprep.subr.mxu0 0.0
  %1063 = vmatpush2.msra.mxu0 0.0
  %1064 = vmatprep.subr.mxu0 0.0
  %1065 = vmatpush2.msra.mxu0 0.0
  %1066 = vmatprep.subr.mxu0 0.0
  %1067 = vmatpush2.msra.mxu0 0.0
  %1068 = vmatprep.subr.mxu0 0.0
  %1069 = vmatpush2.msra.mxu0 0.0
  %1070 = vmatprep.subr.mxu0 0.0
  %1071 = vmatpush2.msra.mxu0 0.0
  %1072 = vmatprep.mubr.f32.mxu0 0.0
  %v1073 = vand.u32 %v12, 4294901760
  %1074 = vmatmul.mubr.f32.gmra.mxu0 %v1073
  %v1075 = vpop.f32.mrf.mxu0
  %v1076 = vadd.f32 %v989, %v1075
  %v1077 = vpop.f32.mrf.mxu0
  %1078 = vdwg.mxu0
  %v1079 = vsub.f32 0.0, %v1076
  %v1080 = vmul.f32 %v1079, 1.442695
  %v1081 = vpow.pop %v1080
  %v1082 = vadd.f32 %v1081, 1.0
  %v1083 = vrcp.pop %v1082
  %1084 = vst [vmem:[%s2] sm:$0x1] %v1083
  // Predicated region
  $region10: #{lr_forward.1} parent=0 // pred_check
    _
  $region11: #{lr_forward.1} parent=0 // pred_check_branch
    %1086 = sbr.rel (0) target = $region13
  $region12: #{lr_forward.1} parent=0 // pred_region
    _
  $region13: #{lr_forward.1} parent=0 // pred_fallthru
    _
  // Predicated region
  $region14: #{lr_forward.1} parent=0 // pred_check
    _
  $region15: #{lr_forward.1} parent=0 // pred_check_branch
    %1088 = sbr.rel (0) target = $region17
  $region16: #{lr_forward.1} parent=0 // pred_region
    _
  $region17: #{lr_forward.1} parent=0 // pred_fallthru
    _

</llo_original>
